<compile_context>
chip_gen: v5e
topology: v5e:2x2
jax: 0.10.0
libtpu: 0.0.40
codegen_flags: <defaults>
</compile_context>

<pallas_src>
import jax
import jax.numpy as jnp
from jax.experimental import pallas as pl
from jax.experimental.pallas import tpu as pltpu

LN_EPS = 1e-5  # module default


# ---------------------------------------------------------------------------
# Kernel: channel LayerNorm on a (1, C, T) tile.
#   x_ref : (1, C, T)   activations (C on sublanes, spatial on lanes)
#   g_ref : (1, C, 1)   per-channel scale
#   b_ref : (1, C, 1)   per-channel bias
#   o_ref : (1, C, T)
# ---------------------------------------------------------------------------
def layernorm_kernel(x_ref, g_ref, b_ref, o_ref):
    x = x_ref[...].astype(jnp.float32)                       # (1, C, T)
    mean = jnp.mean(x, axis=1, keepdims=True)                # (1, 1, T) cross-sublane (XLU)
    xc = x - mean
    var = jnp.mean(xc * xc, axis=1, keepdims=True)           # biased variance
    std = jnp.sqrt(var)
    inv = 1.0 / (std + LN_EPS)                               # eps added to std (PyTorch semantics)
    g = g_ref[...].astype(jnp.float32)
    b = b_ref[...].astype(jnp.float32)
    o_ref[...] = (xc * inv * g + b).astype(o_ref.dtype)


def _pick_spatial_tile(hw, c, dtype_bytes=4, vmem_budget=8 * 1024 * 1024):
    """Largest lane-dense (multiple of 128) tile that divides hw and fits the
    VMEM budget with double-buffered input + output blocks."""
    if hw % 128 != 0:
        # A block equal to the full array dim is always legal.
        return hw
    # 2 buffers x (in block + out block), each c * t * dtype_bytes bytes.
    max_t = vmem_budget // (4 * max(c, 1) * dtype_bytes)
    t = max(128, min((max_t // 128) * 128, hw))
    while hw % t != 0:
        t -= 128
    return t


@jax.jit
def layernorm_forward(x_nchw, g, b):
    """x_nchw: (N, C, H, W). g, b: (1, C, 1, 1). Returns (N, C, H, W)."""
    N, C, H, W = x_nchw.shape
    HW = H * W
    T = _pick_spatial_tile(HW, C, dtype_bytes=x_nchw.dtype.itemsize)

    x3 = x_nchw.reshape(N, C, HW)      # contiguous reshape, no transpose
    g3 = g.reshape(1, C, 1)
    b3 = b.reshape(1, C, 1)

    out3 = pl.pallas_call(
        layernorm_kernel,
        out_shape=jax.ShapeDtypeStruct((N, C, HW), x_nchw.dtype),
        grid_spec=pltpu.PrefetchScalarGridSpec(
            num_scalar_prefetch=0,
            grid=(N, HW // T),
            in_specs=[
                pl.BlockSpec((1, C, T), lambda n, s: (n, 0, s)),
                pl.BlockSpec((1, C, 1), lambda n, s: (0, 0, 0)),
                pl.BlockSpec((1, C, 1), lambda n, s: (0, 0, 0)),
            ],
            out_specs=pl.BlockSpec((1, C, T), lambda n, s: (n, 0, s)),
        ),
        compiler_params=pltpu.CompilerParams(
            dimension_semantics=("parallel", "parallel")),
    )(x3, g3, b3)

    return out3.reshape(N, C, H, W)


# ---------------------------------------------------------------------------
# Pure-JAX reference (mirrors the PyTorch module exactly).
# ---------------------------------------------------------------------------
def layernorm_reference(x, g, b, eps=LN_EPS):
    mean = jnp.mean(x, axis=1, keepdims=True)
    var = jnp.mean((x - mean) ** 2, axis=1, keepdims=True)   # unbiased=False
    std = jnp.sqrt(var)
    return (x - mean) / (std + eps) * g + b


if __name__ == "__main__":
    # Small shapes consistent with the module: NCHW input, dim (=channels) = 4.
    N, C, H, W = 2, 4, 16, 16

    key = jax.random.PRNGKey(0)
    kx, kg, kb = jax.random.split(key, 3)

    x = jax.random.normal(kx, (N, C, H, W), jnp.float32)
    # Module init is g=ones, b=zeros; perturb slightly so the affine path is exercised.
    g = jnp.ones((1, C, 1, 1), jnp.float32) + 0.1 * jax.random.normal(kg, (1, C, 1, 1), jnp.float32)
    b = 0.1 * jax.random.normal(kb, (1, C, 1, 1), jnp.float32)

    out = layernorm_forward(x, g, b)
    out = jax.block_until_ready(out)

    ref = layernorm_reference(x, g, b)
    assert out.shape == (N, C, H, W), out.shape
    assert jnp.allclose(out, ref, atol=1e-5, rtol=1e-5), float(jnp.max(jnp.abs(out - ref)))

    print("KERNEL_OK")
</pallas_src>

<mosaic_0001>
module attributes {stable_mosaic.version = 11 : i64} {
  func.func @layernorm_kernel(%arg0: i32, %arg1: i32, %arg2: memref<1x4x256xf32, #tpu.memory_space<vmem>>, %arg3: memref<1x4x1xf32, #tpu.memory_space<vmem>>, %arg4: memref<1x4x1xf32, #tpu.memory_space<vmem>>, %arg5: memref<1x4x256xf32, #tpu.memory_space<vmem>>) attributes {dimension_semantics = [#tpu.dimension_semantics<parallel>, #tpu.dimension_semantics<parallel>], iteration_bounds = array<i64: 2, 1>, scalar_prefetch = 0 : i64, scratch_operands = 0 : i64, tpu.core_type = #tpu.core_type<tc>, window_params = [{transform_indices = @transform_0, window_bounds = array<i64: 1, 4, 256>}, {pipeline_mode = #tpu.pipeline_mode<synchronous>, transform_indices = @transform_1, window_bounds = array<i64: 1, 4, 1>}, {pipeline_mode = #tpu.pipeline_mode<synchronous>, transform_indices = @transform_2, window_bounds = array<i64: 1, 4, 1>}, {transform_indices = @transform_3, window_bounds = array<i64: 1, 4, 256>}]} {
    %c0 = arith.constant 0 : index
    %c0_0 = arith.constant 0 : index
    %c0_1 = arith.constant 0 : index
    %0 = vector.load %arg2[%c0, %c0_0, %c0_1] : memref<1x4x256xf32, #tpu.memory_space<vmem>>, vector<1x4x256xf32>
    %cst = arith.constant dense<0.000000e+00> : vector<1x256xf32>
    %1 = vector.multi_reduction <add>, %0, %cst [1] : vector<1x4x256xf32> to vector<1x256xf32>
    %2 = vector.shape_cast %1 : vector<1x256xf32> to vector<1x1x256xf32>
    %cst_2 = arith.constant 4.000000e+00 : f32
    %3 = vector.broadcast %cst_2 : f32 to vector<1x1x256xf32>
    %4 = arith.divf %2, %3 : vector<1x1x256xf32>
    %5 = vector.broadcast %4 : vector<1x1x256xf32> to vector<1x4x256xf32>
    %6 = arith.subf %0, %5 : vector<1x4x256xf32>
    %7 = arith.mulf %6, %6 : vector<1x4x256xf32>
    %cst_3 = arith.constant dense<0.000000e+00> : vector<1x256xf32>
    %8 = vector.multi_reduction <add>, %7, %cst_3 [1] : vector<1x4x256xf32> to vector<1x256xf32>
    %9 = vector.shape_cast %8 : vector<1x256xf32> to vector<1x1x256xf32>
    %cst_4 = arith.constant 4.000000e+00 : f32
    %10 = vector.broadcast %cst_4 : f32 to vector<1x1x256xf32>
    %11 = arith.divf %9, %10 : vector<1x1x256xf32>
    %12 = math.sqrt %11 : vector<1x1x256xf32>
    %cst_5 = arith.constant 9.99999974E-6 : f32
    %13 = vector.broadcast %cst_5 : f32 to vector<1x1x256xf32>
    %14 = arith.addf %12, %13 : vector<1x1x256xf32>
    %cst_6 = arith.constant 1.000000e+00 : f32
    %15 = vector.broadcast %cst_6 : f32 to vector<1x1x256xf32>
    %16 = arith.divf %15, %14 : vector<1x1x256xf32>
    %c0_7 = arith.constant 0 : index
    %c0_8 = arith.constant 0 : index
    %c0_9 = arith.constant 0 : index
    %17 = vector.load %arg3[%c0_7, %c0_8, %c0_9] : memref<1x4x1xf32, #tpu.memory_space<vmem>>, vector<1x4x1xf32>
    %c0_10 = arith.constant 0 : index
    %c0_11 = arith.constant 0 : index
    %c0_12 = arith.constant 0 : index
    %18 = vector.load %arg4[%c0_10, %c0_11, %c0_12] : memref<1x4x1xf32, #tpu.memory_space<vmem>>, vector<1x4x1xf32>
    %19 = vector.broadcast %16 : vector<1x1x256xf32> to vector<1x4x256xf32>
    %20 = arith.mulf %6, %19 : vector<1x4x256xf32>
    %21 = vector.broadcast %17 : vector<1x4x1xf32> to vector<1x4x256xf32>
    %22 = arith.mulf %20, %21 : vector<1x4x256xf32>
    %23 = vector.broadcast %18 : vector<1x4x1xf32> to vector<1x4x256xf32>
    %24 = arith.addf %22, %23 : vector<1x4x256xf32>
    %c0_13 = arith.constant 0 : index
    %c0_14 = arith.constant 0 : index
    %c0_15 = arith.constant 0 : index
    %25 = vector.load %arg5[%c0_13, %c0_14, %c0_15] : memref<1x4x256xf32, #tpu.memory_space<vmem>>, vector<1x4x256xf32>
    tpu.vector_store %arg5[%c0_13, %c0_14, %c0_15], %24 {strides = array<i32>} : memref<1x4x256xf32, #tpu.memory_space<vmem>>, vector<1x4x256xf32>,
    return
  }
  func.func @transform_0(%arg0: i32, %arg1: i32) -> (i32, i32, i32) {
    %c0_i32 = arith.constant 0 : i32
    %c0_i32_0 = arith.constant 0 : i32
    return %arg0, %c0_i32, %arg1 : i32, i32, i32
  }
  func.func @transform_1(%arg0: i32, %arg1: i32) -> (i32, i32, i32) {
    %c0_i32 = arith.constant 0 : i32
    %c0_i32_0 = arith.constant 0 : i32
    %c0_i32_1 = arith.constant 0 : i32
    %c0_i32_2 = arith.constant 0 : i32
    return %c0_i32, %c0_i32_0, %c0_i32_1 : i32, i32, i32
  }
  func.func @transform_2(%arg0: i32, %arg1: i32) -> (i32, i32, i32) {
    %c0_i32 = arith.constant 0 : i32
    %c0_i32_0 = arith.constant 0 : i32
    %c0_i32_1 = arith.constant 0 : i32
    %c0_i32_2 = arith.constant 0 : i32
    return %c0_i32, %c0_i32_0, %c0_i32_1 : i32, i32, i32
  }
  func.func @transform_3(%arg0: i32, %arg1: i32) -> (i32, i32, i32) {
    %c0_i32 = arith.constant 0 : i32
    %c0_i32_0 = arith.constant 0 : i32
    return %arg0, %c0_i32, %arg1 : i32, i32, i32
  }
}

</mosaic_0001>

<llo_original>
// kernel: layernorm_forward.1
$region0: #{layernorm_forward.1}
  #allocation0 [shape = 'u32[]', space=smem, size = 0x4, offset = 0x4, fixed_abs, tag = 'smem constant byte address 0x4 - core index']
  #allocation1 [shape = 'u32[72,128]{1,0:T(1,128)}', space=vmem, size = 0x9000, scoped, tag = 'internal scratch']
  %s0 = inlined_call_operand.vmem [shape: f32[2,4,256], index: 0, kind: input, shape index: {}]
  %s1 = inlined_call_operand.vmem [shape: f32[1,4,1], index: 1, kind: input, shape index: {}]
  %s2 = inlined_call_operand.vmem [shape: f32[1,4,1], index: 2, kind: input, shape index: {}]
  %s3 = inlined_call_operand.vmem [shape: f32[2,4,256], index: 3, kind: output, shape index: {}]
  %s4 = sld [smem:[#allocation0]]
  $region45: #{layernorm_forward.1} parent=0
    _
  %s6 = ssub.s32 1, %s4
  %s7 = scalar_select 0, %s6, %s4
  loop: start=0, step=1, limit=4
  $region2: #{layernorm_forward.1} parent=0 // loop_pre_header
    _
  $region3: #{layernorm_forward.1} parent=0 // loop_header
    %s9 = sphi 0, %s13
    %p10 = scmp.ge.s32.totalorder %s9, 4
    %s16 = sphi 0, %s28
    %s17 = sphi 0, %s24
    %s18 = sphi 0, %s16
    %s19 = sphi 0, %s17
    %s20 = sphi 0, %s18
    %s21 = sphi 0, %s19
    %s33 = sphi 0, %s35
    %s36 = sphi 0, %s33
    %s37 = sphi 0, %s36
    %s53 = sphi 0, %s37
    %s57 = sphi 0, %s57
    %s59 = sphi 0, %s57
    %s60 = sphi 0, %s59
    %s74 = sphi 0, %s60
    %s78 = sphi 0, %s78
    %s80 = sphi 0, %s78
    %s81 = sphi 0, %s80
    %s95 = sphi 0, %s81
    %s103 = sphi 0, %s105
    %s106 = sphi 0, %s103
    %s107 = sphi 0, %s106
    %s123 = sphi 0, %s107
  $region4: #{layernorm_forward.1} parent=0 // loop_header_branch
    %12 = sbr.rel (%p10) target = $region8
  $region5: #{layernorm_forward.1} parent=0 // loop_body
    %s14 = ssub.s32 %s9, 1
    %s15 = ssub.s32 %s9, 2
    %s22 = sadd.s32 1, %s17
    %p23 = scmp.ge.s32.totalorder %s22, 1
    %s24 = scalar_select %p23, 0, %s22
    %s25 = sadd.s32 1, %s16
    %s26 = scalar_select %p23, %s25, %s16
    %p27 = scmp.ge.s32.totalorder %s26, 2
    %s28 = scalar_select %p27, 0, %s26
    %s29 = ssub.s32 %s16, %s28
    %s30 = ssub.s32 %s17, %s24
    %s31 = sor.u32 %s29, %s30
    %p32 = scmp.eq.s32.totalorder %s31, 0
    %s34 = sadd.s32 %s33, 1
    %s35 = scalar_select %p32, %s33, %s34
    %p38 = pneg %p32
    %p39 = scmp.eq.s32.totalorder %s9, 1
    %p40 = por %p38, %p39
    %p41 = scmp.ne.s32.totalorder %s33, %s36
    %p42 = scmp.eq.s32.totalorder %s9, 0
    %p43 = por %p41, %p42
    %p44 = scmp.ne.s32.totalorder %s33, %s36
    %p45 = scmp.eq.s32.totalorder %s14, 1
    %p46 = por %p44, %p45
    %p47 = scmp.ne.s32.totalorder %s36, %s37
    %p48 = scmp.eq.s32.totalorder %s14, 0
    %p49 = por %p47, %p48
    %p50 = scmp.ne.s32.totalorder %s36, %s37
    %p51 = scmp.eq.s32.totalorder %s15, 1
    %p52 = por %p50, %p51
    %p54 = scmp.ne.s32.totalorder %s37, %s53
    %p55 = scmp.eq.s32.totalorder %s15, 0
    %p56 = por %p54, %p55
    %s58 = sadd.s32 %s57, 1
    %p61 = scmp.eq.s32.totalorder %s9, 1
    %p62 = scmp.ne.s32.totalorder %s57, %s59
    %p63 = scmp.eq.s32.totalorder %s9, 0
    %p64 = por %p62, %p63
    %p65 = scmp.ne.s32.totalorder %s57, %s59
    %p66 = scmp.eq.s32.totalorder %s14, 1
    %p67 = por %p65, %p66
    %p68 = scmp.ne.s32.totalorder %s59, %s60
    %p69 = scmp.eq.s32.totalorder %s14, 0
    %p70 = por %p68, %p69
    %p71 = scmp.ne.s32.totalorder %s59, %s60
    %p72 = scmp.eq.s32.totalorder %s15, 1
    %p73 = por %p71, %p72
    %p75 = scmp.ne.s32.totalorder %s60, %s74
    %p76 = scmp.eq.s32.totalorder %s15, 0
    %p77 = por %p75, %p76
    %s79 = sadd.s32 %s78, 1
    %p82 = scmp.eq.s32.totalorder %s9, 1
    %p83 = scmp.ne.s32.totalorder %s78, %s80
    %p84 = scmp.eq.s32.totalorder %s9, 0
    %p85 = por %p83, %p84
    %p86 = scmp.ne.s32.totalorder %s78, %s80
    %p87 = scmp.eq.s32.totalorder %s14, 1
    %p88 = por %p86, %p87
    %p89 = scmp.ne.s32.totalorder %s80, %s81
    %p90 = scmp.eq.s32.totalorder %s14, 0
    %p91 = por %p89, %p90
    %p92 = scmp.ne.s32.totalorder %s80, %s81
    %p93 = scmp.eq.s32.totalorder %s15, 1
    %p94 = por %p92, %p93
    %p96 = scmp.ne.s32.totalorder %s81, %s95
    %p97 = scmp.eq.s32.totalorder %s15, 0
    %p98 = por %p96, %p97
    %s99 = ssub.s32 %s16, %s28
    %s100 = ssub.s32 %s17, %s24
    %s101 = sor.u32 %s99, %s100
    %p102 = scmp.eq.s32.totalorder %s101, 0
    %s104 = sadd.s32 %s103, 1
    %s105 = scalar_select %p102, %s103, %s104
    %p108 = pneg %p102
    %p109 = scmp.eq.s32.totalorder %s9, 1
    %p110 = por %p108, %p109
    %p111 = scmp.ne.s32.totalorder %s103, %s106
    %p112 = scmp.eq.s32.totalorder %s9, 0
    %p113 = por %p111, %p112
    %p114 = scmp.ne.s32.totalorder %s103, %s106
    %p115 = scmp.eq.s32.totalorder %s14, 1
    %p116 = por %p114, %p115
    %p117 = scmp.ne.s32.totalorder %s106, %s107
    %p118 = scmp.eq.s32.totalorder %s14, 0
    %p119 = por %p117, %p118
    %p120 = scmp.ne.s32.totalorder %s106, %s107
    %p121 = scmp.eq.s32.totalorder %s15, 1
    %p122 = por %p120, %p121
    %p124 = scmp.ne.s32.totalorder %s107, %s123
    %p125 = scmp.eq.s32.totalorder %s15, 0
    %p126 = por %p124, %p125
    %p127 = scmp.le.s32.totalorder 1, %s9
    %p128 = scmp.lt.s32.totalorder %s9, 3
    %p129 = pnand %p127, %p128
    %p130 = pneg %p129
    // Predicated region
    $region9: #{layernorm_forward.1} parent=5 // pred_check
      _
    $region10: #{layernorm_forward.1} parent=5 // pred_check_branch
      %132 = sbr.rel (%p129) target = $region12
    $region11: #{layernorm_forward.1} parent=5 // pred_region
      %s133 = ssub.s32 %s9, 1
      // Predicated region
      $region13: #{layernorm_forward.1} parent=11 // pred_check
        %p134 = pneg %p70
      $region14: #{layernorm_forward.1} parent=11 // pred_check_branch
        %136 = sbr.rel (%p134) target = $region16
      $region15: #{layernorm_forward.1} parent=11 // pred_region
        _
      $region16: #{layernorm_forward.1} parent=11 // pred_fallthru
        _
      // Predicated region
      $region17: #{layernorm_forward.1} parent=11 // pred_check
        %p137 = pneg %p91
      $region18: #{layernorm_forward.1} parent=11 // pred_check_branch
        %139 = sbr.rel (%p137) target = $region20
      $region19: #{layernorm_forward.1} parent=11 // pred_region
        _
      $region20: #{layernorm_forward.1} parent=11 // pred_fallthru
        _
    $region12: #{layernorm_forward.1} parent=5 // pred_fallthru
      _
    %p140 = scmp.lt.s32.totalorder %s9, 2
    // Predicated region
    $region21: #{layernorm_forward.1} parent=5 // pred_check
      %p141 = pneg %p140
    $region22: #{layernorm_forward.1} parent=5 // pred_check_branch
      %143 = sbr.rel (%p141) target = $region24
    $region23: #{layernorm_forward.1} parent=5 // pred_region
      // Predicated region
      $region25: #{layernorm_forward.1} parent=23 // pred_check
        %p144 = pneg %p43
      $region26: #{layernorm_forward.1} parent=23 // pred_check_branch
        %146 = sbr.rel (%p144) target = $region28
      $region27: #{layernorm_forward.1} parent=23 // pred_region
        %s147 = smul.u32 2, %s17
        %p148 = scmp.lt.s32.totalorder %s16, 1
        %s149 = scalar_select %p148, %s16, 1
        %p150 = scmp.lt.s32.totalorder %s147, 1
        %s151 = scalar_select %p150, %s147, 1
        %s152 = smul.addr %s149, 2
        %s153 = sadd.s32 %s151, %s152
        %s154 = smul.addr %s153, 4
        %s155 = scalar_lea.vmem %s0, %s154
        %s156 = smul.u32 2, %s17
      $region28: #{layernorm_forward.1} parent=23 // pred_fallthru
        _
    $region24: #{layernorm_forward.1} parent=5 // pred_fallthru
      _
    %p157 = scmp.le.s32.totalorder 1, %s9
    %p158 = scmp.lt.s32.totalorder %s9, 3
    %p159 = pnand %p157, %p158
    %p160 = pneg %p159
    // Predicated region
    $region29: #{layernorm_forward.1} parent=5 // pred_check
      _
    $region30: #{layernorm_forward.1} parent=5 // pred_check_branch
      %162 = sbr.rel (%p159) target = $region32
    $region31: #{layernorm_forward.1} parent=5 // pred_region
      %s163 = ssub.s32 %s9, 1
      %s164 = smul.u32 2, %s19
      %p165 = scmp.lt.s32.totalorder %s18, 1
      %s166 = scalar_select %p165, %s18, 1
      %p167 = scmp.lt.s32.totalorder %s164, 1
      %s168 = scalar_select %p167, %s164, 1
      %s169 = smul.addr %s166, 2
      %s170 = sadd.s32 %s168, %s169
      %s171 = smul.addr %s170, 4
      %s172 = scalar_lea.vmem %s0, %s171
      %p173 = pneg %p49
      %p174 = pneg %p46
      %p175 = pneg %p70
      %p176 = pneg %p67
      %p177 = pneg %p91
      %p178 = pneg %p88
      %p179 = pneg %p119
      %p180 = pneg %p116
      %s181 = smul.u32 2, %s19
      %p182 = scmp.lt.s32.totalorder %s18, 1
      %s183 = scalar_select %p182, %s18, 1
      %p184 = scmp.lt.s32.totalorder %s181, 1
      %s185 = scalar_select %p184, %s181, 1
      %s186 = smul.addr %s183, 2
      %s187 = sadd.s32 %s185, %s186
      %s188 = smul.addr %s187, 4
      %s189 = scalar_lea.vmem %s3, %s188
      %s190 = smul.u32 2, %s19
      %p191 = scmp.lt.s32.totalorder %s18, 1
      %s192 = scalar_select %p191, %s18, 1
      %p193 = scmp.lt.s32.totalorder %s190, 1
      %s194 = scalar_select %p193, %s190, 1
      %s195 = smul.addr %s192, 2
      %s196 = sadd.s32 %s194, %s195
      %s197 = smul.addr %s196, 4
      %s198 = scalar_lea.vmem %s0, %s197
      %s199 = smul.u32 2, %s19
      %s200 = smul.u32 2, %s19
      %p201 = scmp.lt.s32.totalorder %s18, 1
      %s202 = scalar_select %p201, %s18, 1
      %p203 = scmp.lt.s32.totalorder %s200, 1
      %s204 = scalar_select %p203, %s200, 1
      %s205 = smul.addr %s202, 2
      %s206 = sadd.s32 %s204, %s205
      %s207 = smul.addr %s206, 4
      %s208 = scalar_lea.vmem %s3, %s207
      %s209 = smul.u32 2, %s19
      %v210 = vld [vmem:[%s198] sm:$0xff]
      %212 = vst [vmem:[#allocation1] ss:$2 sm:$0xff] %v210
      %v213 = vld.sshfl [vmem:[#allocation1] sm:$0xff pattern:$0x75316420]
      %v214 = vld.sshfl [vmem:[#allocation1 + $0x8] sm:$0xff pattern:$0x75316420]
      %vm217 = vcmask 1043456
      %v218 = vsel %vm217, %v213, 0.0
      %v219 = vrot.slane %v218, 4
      %v220 = vadd.f32 %v218, %v219
      %v221 = vrot.slane %v220, 2
      %v222 = vadd.f32 %v220, %v221
      %v223 = vrot.slane %v222, 1
      %v224 = vadd.f32 %v222, %v223
      %v225 = vsel %vm217, %v214, 0.0
      %v226 = vrot.slane %v225, 4
      %v227 = vadd.f32 %v225, %v226
      %v228 = vrot.slane %v227, 2
      %v229 = vadd.f32 %v227, %v228
      %v230 = vrot.slane %v229, 1
      %v231 = vadd.f32 %v229, %v230
      %v232 = vrcp.pop 4.0
      %v233 = vmul.f32 4.0, %v232
      %v234 = vsub.f32 1.0, %v233
      %v235 = vmul.f32 %v232, %v234
      %v236 = vadd.f32 %v232, %v235
      %vm237 = vweird.f32 %v232
      %v238 = vsel %vm237, %v232, %v236
      %v239 = vmul.f32 %v224, %v238
      %v240 = vmul.f32 %v231, %v238
      %v243 = vrot.slane %v240, 4
      %v244 = vsel %vm217, %v239, %v243
      %v246 = vsub.f32 %v210, %v244
      %v247 = vmul.f32 %v246, %v246
      %249 = vst [vmem:[#allocation1] ss:$2 sm:$0xff] %v247
      %v250 = vld.sshfl [vmem:[#allocation1] sm:$0xff pattern:$0x75316420]
      %v251 = vld.sshfl [vmem:[#allocation1 + $0x8] sm:$0xff pattern:$0x75316420]
      %v254 = vsel %vm217, %v250, 0.0
      %v255 = vrot.slane %v254, 4
      %v256 = vadd.f32 %v254, %v255
      %v257 = vrot.slane %v256, 2
      %v258 = vadd.f32 %v256, %v257
      %v259 = vrot.slane %v258, 1
      %v260 = vadd.f32 %v258, %v259
      %v261 = vsel %vm217, %v251, 0.0
      %v262 = vrot.slane %v261, 4
      %v263 = vadd.f32 %v261, %v262
      %v264 = vrot.slane %v263, 2
      %v265 = vadd.f32 %v263, %v264
      %v266 = vrot.slane %v265, 1
      %v267 = vadd.f32 %v265, %v266
      %v268 = vmul.f32 %v260, %v238
      %v269 = vmul.f32 %v267, %v238
      %v270 = vrsqrt.pop %v268
      %v271 = vmul.f32 %v270, %v268
      %v272 = vmul.f32 %v271, %v270
      %v273 = vmul.f32 0.5, %v272
      %v274 = vsub.f32 1.5, %v273
      %v275 = vmul.f32 %v270, %v274
      %v276 = vmul.f32 %v268, %v275
      %vm277 = vcmp.eq.f32.partialorder %v268, inf
      %v278 = vsel %vm277, %v268, %v276
      %vm279 = vcmp.eq.f32.partialorder %v268, 0.0
      %v280 = vand.u32 %v268, 2147483648
      %v281 = vsel %vm279, %v280, %v278
      %v282 = vrsqrt.pop %v269
      %v283 = vmul.f32 %v282, %v269
      %v284 = vmul.f32 %v283, %v282
      %v285 = vmul.f32 0.5, %v284
      %v286 = vsub.f32 1.5, %v285
      %v287 = vmul.f32 %v282, %v286
      %v288 = vmul.f32 %v269, %v287
      %vm289 = vcmp.eq.f32.partialorder %v269, inf
      %v290 = vsel %vm289, %v269, %v288
      %vm291 = vcmp.eq.f32.partialorder %v269, 0.0
      %v292 = vand.u32 %v269, 2147483648
      %v293 = vsel %vm291, %v292, %v290
      %v294 = vadd.f32 %v281, 1e-05
      %v295 = vadd.f32 %v293, 1e-05
      %v296 = vrcp.pop %v294
      %v297 = vmul.f32 %v294, %v296
      %v298 = vsub.f32 1.0, %v297
      %v299 = vmul.f32 %v296, %v298
      %v300 = vadd.f32 %v296, %v299
      %vm301 = vweird.f32 %v294
      %vm302 = vweird.f32 %v296
      %vm303 = vmor %vm301, %vm302
      %v304 = vsel %vm303, %v296, %v300
      %v305 = vand.u32 2147483647, %v294
      %vm306 = vcmp.eq.f32.partialorder %v305, 8.507059e+37
      %v307 = vand.u32 %v294, 2147483648
      %v308 = vor.u32 1.1754944e-38, %v307
      %v309 = vsel %vm306, %v308, %v304
      %v310 = vmul.f32 1.0, %v309
      %v311 = vrcp.pop %v295
      %v312 = vmul.f32 %v295, %v311
      %v313 = vsub.f32 1.0, %v312
      %v314 = vmul.f32 %v311, %v313
      %v315 = vadd.f32 %v311, %v314
      %vm316 = vweird.f32 %v295
      %vm317 = vweird.f32 %v311
      %vm318 = vmor %vm316, %vm317
      %v319 = vsel %vm318, %v311, %v315
      %v320 = vand.u32 2147483647, %v295
      %vm321 = vcmp.eq.f32.partialorder %v320, 8.507059e+37
      %v322 = vand.u32 %v295, 2147483648
      %v323 = vor.u32 1.1754944e-38, %v322
      %v324 = vsel %vm321, %v323, %v319
      %v325 = vmul.f32 1.0, %v324
      %v326 = vld [vmem:[%s1] sm:$0xf]
      %v327 = vld [vmem:[%s2] sm:$0xf]
      %v330 = vrot.slane %v325, 4
      %v331 = vsel %vm217, %v310, %v330
      %v333 = vmul.f32 %v246, %v331
      %335 = vset.pattern.permute.xlu0 0
      %336 = vperm.xlu0 %335, %v326
      %v337 = vpop.permute.xlu0 %336
      %v339 = vunpack.c.l.s4 839922192
      %v340 = vunpack.c.0.s8 %v339
      %v341 = vperm.slane %v337, %v340
      %v343 = vmul.f32 %v333, %v341
      %345 = vset.pattern.permute.xlu0 0
      %346 = vperm.xlu0 %345, %v327
      %v347 = vpop.permute.xlu0 %346
      %v349 = vunpack.c.l.s4 839922192
      %v350 = vunpack.c.0.s8 %v349
      %v351 = vperm.slane %v347, %v350
      %v353 = vadd.f32 %v343, %v351
      %354 = vst [vmem:[%s208] sm:$0xff] %v353
      %s355 = smul.u32 2, %s19
      %p356 = scmp.lt.s32.totalorder %s18, 1
      %s357 = scalar_select %p356, %s18, 1
      %p358 = scmp.lt.s32.totalorder %s355, 1
      %s359 = scalar_select %p358, %s355, 1
      %s360 = smul.addr %s357, 2
      %s361 = sadd.s32 %s359, %s360
      %s362 = smul.addr %s361, 4
      %s363 = scalar_lea.vmem %s3, %s362
      // Predicated region
      $region33: #{layernorm_forward.1} parent=31 // pred_check
        %p364 = pneg %p116
      $region34: #{layernorm_forward.1} parent=31 // pred_check_branch
        %366 = sbr.rel (%p364) target = $region36
      $region35: #{layernorm_forward.1} parent=31 // pred_region
        %s367 = smul.u32 2, %s19
      $region36: #{layernorm_forward.1} parent=31 // pred_fallthru
        _
    $region32: #{layernorm_forward.1} parent=5 // pred_fallthru
      _
    %p368 = scmp.le.s32.totalorder 2, %s9
    // Predicated region
    $region37: #{layernorm_forward.1} parent=5 // pred_check
      %p369 = pneg %p368
    $region38: #{layernorm_forward.1} parent=5 // pred_check_branch
      %371 = sbr.rel (%p369) target = $region40
    $region39: #{layernorm_forward.1} parent=5 // pred_region
      %s372 = ssub.s32 %s9, 2
      // Predicated region
      $region41: #{layernorm_forward.1} parent=39 // pred_check
        %p373 = pneg %p122
      $region42: #{layernorm_forward.1} parent=39 // pred_check_branch
        %375 = sbr.rel (%p373) target = $region44
      $region43: #{layernorm_forward.1} parent=39 // pred_region
        %s376 = smul.u32 2, %s21
        %p377 = scmp.lt.s32.totalorder %s20, 1
        %s378 = scalar_select %p377, %s20, 1
        %p379 = scmp.lt.s32.totalorder %s376, 1
        %s380 = scalar_select %p379, %s376, 1
        %s381 = smul.addr %s378, 2
        %s382 = sadd.s32 %s380, %s381
        %s383 = smul.addr %s382, 4
        %s384 = scalar_lea.vmem %s3, %s383
      $region44: #{layernorm_forward.1} parent=39 // pred_fallthru
        _
    $region40: #{layernorm_forward.1} parent=5 // pred_fallthru
      _
  $region6: #{layernorm_forward.1} parent=0 // loop_footer
    %s13 = sadd.s32 1, %s9
  $region7: #{layernorm_forward.1} parent=0 // loop_footer_branch
    %8 = sbr.rel target = $region3
  $region8: #{layernorm_forward.1} parent=0 // loop_exit
    _

</llo_original>
